<compile_context>
chip_gen: v7x
topology: tpu7x:2x2x1
jax: 0.10.0
libtpu: 0.0.40
codegen_flags: <defaults>
</compile_context>

<pallas_src>
import math
from functools import partial

import jax
import jax.numpy as jnp
from jax.experimental import pallas as pl
from jax.experimental.pallas import tpu as pltpu


def _compose_s2d_weight(w1, w2):
    """Compose two 3x3/stride-2/pad-1 convs (HWIO, bias-free, no norm/activation in
    between -- exactly the from_patch=True / patch_size=4 configuration) into one
    7x7/stride-4/pad-3 conv, rearranged for the space-to-depth-by-4 block-conv
    formulation used by the kernel.

    Returns a (4 * 16 * Cin, Cout2) matrix whose row index is the flatten of
    (block_i, block_j, u, v, ci): block_* in {0,1} are the 2x2 block-conv taps and
    (u, v) the position inside a 4x4 space-to-depth block.  Exact for H,W % 4 == 0.
    """
    _, _, cin, _ = w1.shape
    _, _, _, c2 = w2.shape
    w7 = jnp.zeros((7, 7, cin, c2), jnp.float32)
    for kh2 in range(3):
        for kw2 in range(3):
            # conv2 tap (kh2, kw2) applied to conv1: effective offset = 2*kh2 + kh1.
            blk = jnp.einsum('abic,co->abio', w1.astype(jnp.float32),
                             w2[kh2, kw2].astype(jnp.float32))
            w7 = w7.at[2 * kh2:2 * kh2 + 3, 2 * kw2:2 * kw2 + 3].add(blk)
    # With 4 rows/cols of zero padding on top/left in the wrapper, the pad-3 window
    # of output (i, j) starts at offset 1 inside space-to-depth block (i, j); row/col
    # 0 of the embedded 8x8 kernel is therefore zero (unused).
    w8 = jnp.zeros((8, 8, cin, c2), jnp.float32).at[1:, 1:].set(w7)
    # (8,8,Cin,C2) -> (bi,u,bj,v,ci,co) -> (bi,bj,u,v,ci,co) -> (4*16*Cin, C2)
    wb = w8.reshape(2, 4, 2, 4, cin, c2).transpose(0, 2, 1, 3, 4, 5)
    return wb.reshape(4 * 16 * cin, c2)


def _patch_proj_kernel(x_ref, halo_ref, w_ref, o_ref, *, rt, wo, c2, feat):
    """One (batch, row-tile) grid step of the 2x2 block conv over the s2d input.

    x_ref:    (rt, wo + 1, feat) bf16  -- s2d rows [r*rt, r*rt + rt)
    halo_ref: (1,  wo + 1, feat) bf16  -- s2d row r*rt + rt (1-row halo)
    w_ref:    (4 * feat, c2)     bf16  -- composed weight, constant over the grid
    o_ref:    (rt * wo, c2)            -- contiguous slab of the (B, ho*wo, c2) output
    """
    xb = jnp.concatenate([x_ref[...], halo_ref[...]], axis=0)    # (rt+1, wo+1, feat)
    # Fused im2col: 4 rectangular tap slices + one lane concat -> (rt, wo, 4*feat).
    taps = [xb[bi:bi + rt, bj:bj + wo, :] for bi in (0, 1) for bj in (0, 1)]
    patches = jnp.concatenate(taps, axis=-1).reshape(rt * wo, 4 * feat)
    # Single bf16 x bf16 MXU matmul with f32 accumulation: M = rt*wo, K = 4*feat.
    acc = jnp.dot(patches, w_ref[...], preferred_element_type=jnp.float32)
    o_ref[...] = acc.astype(o_ref.dtype)                         # single cast + store


def _pick_row_tile(ho, wo, feat, c2, target_bytes=2 << 20):
    """Largest row tile that is a multiple of 8 and divides ho with an in+out block
    of roughly <= target_bytes; falls back to the whole image for small/awkward ho."""
    per_row = ((wo + 1) * feat + wo * c2) * 2          # bf16 input row + output row
    rt_max = min(ho, max(8, target_bytes // max(per_row, 1)))
    for rt in range(int(rt_max), 7, -1):
        if ho % rt == 0 and rt % 8 == 0:
            return rt
    return ho


def fused_patch_proj(s2d, wmat, ho, wo, c2, out_dtype):
    """s2d: (B, ho+1, wo+1, 16*Cin) bf16; wmat: (4*16*Cin, c2) bf16.
    Returns (B, ho*wo, c2) in out_dtype via a single pallas_call."""
    bsz, _, wb, feat = s2d.shape
    kk, _ = wmat.shape
    rt = _pick_row_tile(ho, wo, feat, c2)
    n_rt = ho // rt
    kernel = partial(_patch_proj_kernel, rt=rt, wo=wo, c2=c2, feat=feat)

    # Explicit VMEM budget: double-buffered input/output blocks + weight + headroom.
    in_bytes = (rt + 1) * wb * feat * 2
    out_bytes = rt * wo * c2 * jnp.dtype(out_dtype).itemsize
    w_bytes = kk * c2 * 2
    vmem_limit = int(min(64 << 20,
                         max(8 << 20, 4 * (in_bytes + out_bytes) + 2 * w_bytes + (2 << 20))))

    return pl.pallas_call(
        kernel,
        out_shape=jax.ShapeDtypeStruct((bsz, ho * wo, c2), out_dtype),
        grid_spec=pltpu.PrefetchScalarGridSpec(
            num_scalar_prefetch=0,
            grid=(bsz, n_rt),
            in_specs=[
                # rt-row slab of this batch element's s2d image (batch dim squeezed).
                pl.BlockSpec((None, rt, wb, feat), lambda b, r: (b, r, 0, 0)),
                # 1-row halo just below the slab: block size 1 on the row axis, so the
                # returned block index is the element row r*rt + rt (<= ho, in bounds).
                pl.BlockSpec((None, 1, wb, feat), lambda b, r: (b, (r + 1) * rt, 0, 0)),
                # Composed weight: constant block index -> stays resident across steps.
                # TODO(synk): pipeline_mode=pl.Buffered(1) would drop its second buffer
                # (only ~kk*c2*2 bytes); left at the default to keep lowering conservative.
                pl.BlockSpec((kk, c2), lambda b, r: (0, 0)),
            ],
            out_specs=pl.BlockSpec((None, rt * wo, c2), lambda b, r: (b, r, 0))),
        compiler_params=pltpu.CompilerParams(
            # Both grid axes are independent -> megacore-shardable on v7x even for B==1.
            # TODO(synk): on single-TC chips (v5e/v6e) with toy inputs the whole batch
            # could be folded into one grid step to shave ~0.35us/step of overhead.
            dimension_semantics=("parallel", "parallel"),
            vmem_limit_bytes=vmem_limit),
    )(s2d, s2d, wmat)


class ConvPatchProj:
    """from_patch=True, use_hr=False, skip_channels=0 configuration of the PyTorch
    module, for patch_size=4 (two bias-free stride-2 3x3 convs, no norm/activation
    between them)."""

    def __init__(self, patch_size, embed_dim, num_channels, key,
                 out_dtype=jnp.bfloat16):
        # TODO(synk): CustomNorm is not defined in the reference source; configurations
        # that instantiate it (patch_size > 4, from_patch=False, use_hr=True) are omitted.
        assert patch_size == 4, "patch_size=4 keeps build_layers free of CustomNorm"
        self.num_channels = num_channels
        self.embed_dim = embed_dim
        # bf16 output halves HBM writeback (MXU operands are already bf16); pass
        # jnp.float32 for strict dtype parity with the f32 PyTorch module.
        self.out_dtype = out_dtype
        num_dims = int(math.log2(patch_size))
        dims = [embed_dim // 2 ** k for k in range(num_dims)] + [num_channels]
        dims.reverse()                                   # from_patch=True
        layer_dims, proj_dims = dims[1:], dims[:2]       # e.g. [16, 32], (4, 16)

        def init(k, cin, cout):
            # Deterministic init; PyTorch OIHW weight <-> HWIO via transpose(2, 3, 1, 0).
            fan_in = 9 * cin
            return (jax.random.normal(k, (3, 3, cin, cout), jnp.float32)
                    / math.sqrt(fan_in))

        k0, k1 = jax.random.split(key)
        self.w_proj = init(k0, proj_dims[0], proj_dims[1])          # self.proj
        self.w_layers = [init(k1, layer_dims[0], layer_dims[1])]    # self.layers (1 conv)
        # proj and layers[0] are bias-free (conv3x3 has bias=False) with no
        # norm/activation between them in this configuration, so compose them ONCE at
        # init into a single effective 7x7/stride-4 conv.  (Do NOT apply this
        # composition if build_layers ever inserts a norm/GELU between the two convs.)
        self.wmat = _compose_s2d_weight(
            self.w_proj, self.w_layers[0]).astype(jnp.bfloat16)

    def __call__(self, x_nchw):
        B, C, H, W = x_nchw.shape
        if C == self.num_channels - 1:
            x_nchw = jnp.concatenate([x_nchw, jnp.ones_like(x_nchw[:, :1])], axis=1)
        if C == self.num_channels + 1:
            x_nchw = x_nchw[:, :self.num_channels]
        cin = self.num_channels
        assert x_nchw.shape[1] == cin
        assert H % 4 == 0 and W % 4 == 0, "composed 7x7/stride-4 conv needs H,W % 4 == 0"
        ho, wo, c2 = H // 4, W // 4, self.embed_dim
        # Layout prep (cheap pass over the raw input): NCHW->NHWC, pad 4 on top/left,
        # space-to-depth by 4, cast to bf16.  Everything heavy (im2col taps, both
        # convs, the matmul) runs inside the single pallas_call.
        # TODO(synk): for large images verify XLA fuses this chain into one pass; if it
        # materializes intermediates, fold the space-to-depth into the kernel via
        # strided DMA (or have the upstream producer emit the s2d layout directly).
        x = jnp.transpose(x_nchw, (0, 2, 3, 1))
        x = jnp.pad(x, ((0, 0), (4, 0), (4, 0), (0, 0)))
        x = x.reshape(B, ho + 1, 4, wo + 1, 4, cin)
        x = jnp.transpose(x, (0, 1, 3, 2, 4, 5))
        s2d = x.reshape(B, ho + 1, wo + 1, 16 * cin).astype(jnp.bfloat16)
        # Output is already (B, ho*wo, c2) with the same row-major (h, w) ordering as
        # PyTorch's flatten(2).transpose(1, 2); no further reshape needed.
        return fused_patch_proj(s2d, self.wmat, ho, wo, c2, self.out_dtype)


def _ref_forward(model, x_nchw):
    """Plain-JAX reference (f32 XLA convs with the original two-step weights)."""
    def conv(x, w):
        return jax.lax.conv_general_dilated(
            x, w, window_strides=(2, 2), padding=((1, 1), (1, 1)),
            dimension_numbers=("NCHW", "HWIO", "NCHW"))
    x = conv(x_nchw, model.w_proj)
    for w in model.w_layers:
        x = conv(x, w)
    B, C, H, W = x.shape
    return jnp.transpose(x.reshape(B, C, H * W), (0, 2, 1))


if __name__ == "__main__":
    key = jax.random.PRNGKey(0)
    kx, kw = jax.random.split(key)
    # B=2, C=num_channels=4, H=W=16, patch_size=4, embed_dim=32
    x = jax.random.normal(kx, (2, 4, 16, 16), jnp.float32)
    model = ConvPatchProj(patch_size=4, embed_dim=32, num_channels=4, key=kw)

    fwd = jax.jit(model.__call__)
    out = fwd(x)
    jax.block_until_ready(out)

    assert out.shape == (2, 16, 32), out.shape           # (B, H/4 * W/4, embed_dim)
    ref = _ref_forward(model, x)
    # bf16 MXU operands + bf16 output vs. the all-f32 XLA reference -> loose tolerance.
    err = float(jnp.max(jnp.abs(out.astype(jnp.float32) - ref)))
    assert err < 8e-2, f"max |err| = {err}"
    print("KERNEL_OK")
</pallas_src>

<mosaic_0001>
module attributes {stable_mosaic.version = 11 : i64} {
  func.func @_patch_proj_kernel(%arg0: i32, %arg1: i32, %arg2: memref<1x4x5x64xbf16, #tpu.memory_space<vmem>>, %arg3: memref<1x1x5x64xbf16, #tpu.memory_space<vmem>>, %arg4: memref<256x32xbf16, #tpu.memory_space<vmem>>, %arg5: memref<1x16x32xbf16, #tpu.memory_space<vmem>>) attributes {dimension_semantics = [#tpu.dimension_semantics<parallel>, #tpu.dimension_semantics<parallel>], iteration_bounds = array<i64: 2, 1>, scalar_prefetch = 0 : i64, scratch_operands = 0 : i64, tpu.core_type = #tpu.core_type<tc>, window_params = [{transform_indices = @transform_0, window_bounds = array<i64: 1, 4, 5, 64>}, {transform_indices = @transform_1, window_bounds = array<i64: 1, 1, 5, 64>}, {pipeline_mode = #tpu.pipeline_mode<synchronous>, transform_indices = @transform_2, window_bounds = array<i64: 256, 32>}, {transform_indices = @transform_3, window_bounds = array<i64: 1, 16, 32>}]} {
    %c0 = arith.constant 0 : index
    %c0_0 = arith.constant 0 : index
    %c0_1 = arith.constant 0 : index
    %c0_2 = arith.constant 0 : index
    %0 = vector.load %arg2[%c0, %c0_0, %c0_1, %c0_2] : memref<1x4x5x64xbf16, #tpu.memory_space<vmem>>, vector<1x4x5x64xbf16>
    %1 = vector.shape_cast %0 : vector<1x4x5x64xbf16> to vector<4x5x64xbf16>
    %c0_3 = arith.constant 0 : index
    %c0_4 = arith.constant 0 : index
    %c0_5 = arith.constant 0 : index
    %c0_6 = arith.constant 0 : index
    %2 = vector.load %arg3[%c0_3, %c0_4, %c0_5, %c0_6] : memref<1x1x5x64xbf16, #tpu.memory_space<vmem>>, vector<1x1x5x64xbf16>
    %3 = vector.shape_cast %2 : vector<1x1x5x64xbf16> to vector<1x5x64xbf16>
    %4 = tpu.concatenate %1, %3 in 0 : vector<4x5x64xbf16>, vector<1x5x64xbf16> -> vector<5x5x64xbf16>
    %5 = vector.extract_strided_slice %4 {offsets = [0, 0, 0], sizes = [4, 4, 64], strides = [1, 1, 1]} : vector<5x5x64xbf16> to vector<4x4x64xbf16>
    %6 = vector.extract_strided_slice %4 {offsets = [0, 1, 0], sizes = [4, 4, 64], strides = [1, 1, 1]} : vector<5x5x64xbf16> to vector<4x4x64xbf16>
    %7 = vector.extract_strided_slice %4 {offsets = [1, 0, 0], sizes = [4, 4, 64], strides = [1, 1, 1]} : vector<5x5x64xbf16> to vector<4x4x64xbf16>
    %8 = vector.extract_strided_slice %4 {offsets = [1, 1, 0], sizes = [4, 4, 64], strides = [1, 1, 1]} : vector<5x5x64xbf16> to vector<4x4x64xbf16>
    %9 = tpu.concatenate %5, %6, %7, %8 in 2 : vector<4x4x64xbf16>, vector<4x4x64xbf16>, vector<4x4x64xbf16>, vector<4x4x64xbf16> -> vector<4x4x256xbf16>
    %10 = vector.shape_cast %9 : vector<4x4x256xbf16> to vector<16x256xbf16>
    %c0_7 = arith.constant 0 : index
    %c0_8 = arith.constant 0 : index
    %11 = vector.load %arg4[%c0_7, %c0_8] : memref<256x32xbf16, #tpu.memory_space<vmem>>, vector<256x32xbf16>
    %cst = arith.constant dense<0.000000e+00> : vector<16x32xf32>
    %12 = tpu.matmul %10, %11, %cst {dimension_numbers = #tpu.dot_dimension_numbers<[1], [0], [0], [1], [0, 0, 1, 1], [], []>} : vector<16x256xbf16>, vector<256x32xbf16>, vector<16x32xf32> -> vector<16x32xf32>
    %13 = arith.truncf %12 : vector<16x32xf32> to vector<16x32xbf16>
    %c0_9 = arith.constant 0 : index
    %c0_10 = arith.constant 0 : index
    %c0_11 = arith.constant 0 : index
    %14 = vector.load %arg5[%c0_9, %c0_10, %c0_11] : memref<1x16x32xbf16, #tpu.memory_space<vmem>>, vector<1x16x32xbf16>
    %15 = vector.shape_cast %14 : vector<1x16x32xbf16> to vector<16x32xbf16>
    %16 = vector.shape_cast %13 : vector<16x32xbf16> to vector<1x16x32xbf16>
    tpu.vector_store %arg5[%c0_9, %c0_10, %c0_11], %16 {strides = array<i32>} : memref<1x16x32xbf16, #tpu.memory_space<vmem>>, vector<1x16x32xbf16>,
    return
  }
  func.func @transform_0(%arg0: i32, %arg1: i32) -> (i32, i32, i32, i32) {
    %c0_i32 = arith.constant 0 : i32
    %c0_i32_0 = arith.constant 0 : i32
    %c0_i32_1 = arith.constant 0 : i32
    return %arg0, %arg1, %c0_i32, %c0_i32_0 : i32, i32, i32, i32
  }
  func.func @transform_1(%arg0: i32, %arg1: i32) -> (i32, i32, i32, i32) {
    %c1_i32 = arith.constant 1 : i32
    %0 = arith.addi %arg1, %c1_i32 : i32
    %c4_i32 = arith.constant 4 : i32
    %1 = arith.muli %0, %c4_i32 : i32
    %c0_i32 = arith.constant 0 : i32
    %c0_i32_0 = arith.constant 0 : i32
    %c0_i32_1 = arith.constant 0 : i32
    return %arg0, %1, %c0_i32, %c0_i32_0 : i32, i32, i32, i32
  }
  func.func @transform_2(%arg0: i32, %arg1: i32) -> (i32, i32) {
    %c0_i32 = arith.constant 0 : i32
    %c0_i32_0 = arith.constant 0 : i32
    %c0_i32_1 = arith.constant 0 : i32
    return %c0_i32, %c0_i32_0 : i32, i32
  }
  func.func @transform_3(%arg0: i32, %arg1: i32) -> (i32, i32, i32) {
    %c0_i32 = arith.constant 0 : i32
    %c0_i32_0 = arith.constant 0 : i32
    return %arg0, %arg1, %c0_i32 : i32, i32, i32
  }
}

</mosaic_0001>

<llo_original>
// kernel: a_call__.1
$region0: #{a_call__.1}
  #allocation0 [shape = 'u32[]', space=smem, size = 0x4, offset = 0x4, fixed_abs, tag = 'smem constant byte address 0x4 - core index']
  #allocation1 [shape = 'u32[144,128]{1,0:T(1,128)}', space=vmem, size = 0x12000, scoped, tag = 'internal scratch']
  %s0 = inlined_call_operand.vmem [shape: bf16[2,5,5,64], index: 0, kind: input, shape index: {}, may-alias: {0,1}]
  %s1 = inlined_call_operand.vmem [shape: bf16[2,5,5,64], index: 1, kind: input, shape index: {}, may-alias: {0,1}]
  %s2 = inlined_call_operand.vmem [shape: bf16[256,32], index: 2, kind: input, shape index: {}]
  %s3 = inlined_call_operand.hbm [shape: bf16[2,16,32], index: 3, kind: output, shape index: {}]
  %s4 = sld [smem:[#allocation0]]
  $region45: #{a_call__.1} parent=0
    _
  %s6 = ssub.s32 1, %s4
  %s7 = scalar_select 0, %s6, %s4
  $region1: #{a_call__.1} parent=0
    #allocation2 [shape = 'u8[8192]{0}', space=vmem, size = 0x2000, scoped, tag = 'output window, operand 0']
    #allocation3 [shape = 's32[2]{0}', space=sflag, size = 0x8, scoped, tag = 'scoped memory for a_call__.1']
    %8 = vsyncpa [#allocation3], 0
    %s9 = scalar_lea.sflag [#allocation3], 1
    %10 = vsyncpa %s9, 0
    loop: start=0, step=1, limit=4
    $region2: #{a_call__.1} parent=1 // loop_pre_header
      _
    $region3: #{a_call__.1} parent=1 // loop_header
      %s12 = sphi 0, %s16
      %p13 = scmp.ge.s32.totalorder %s12, 4
      %s19 = sphi 0, %s31
      %s20 = sphi 0, %s27
      %s21 = sphi 0, %s19
      %s22 = sphi 0, %s20
      %s23 = sphi 0, %s21
      %s24 = sphi 0, %s22
      %s36 = sphi 0, %s38
      %s39 = sphi 0, %s36
      %s40 = sphi 0, %s39
      %s56 = sphi 0, %s40
      %s68 = sphi 0, %s70
      %s71 = sphi 0, %s68
      %s72 = sphi 0, %s71
      %s88 = sphi 0, %s72
      %s92 = sphi 0, %s92
      %s94 = sphi 0, %s92
      %s95 = sphi 0, %s94
      %s109 = sphi 0, %s95
      %s117 = sphi 0, %s119
      %s120 = sphi 0, %s117
      %s121 = sphi 0, %s120
      %s137 = sphi 0, %s121
    $region4: #{a_call__.1} parent=1 // loop_header_branch
      %15 = sbr.rel (%p13) target = $region8
    $region5: #{a_call__.1} parent=1 // loop_body
      %s17 = ssub.s32 %s12, 1
      %s18 = ssub.s32 %s12, 2
      %s25 = sadd.s32 1, %s20
      %p26 = scmp.ge.s32.totalorder %s25, 1
      %s27 = scalar_select %p26, 0, %s25
      %s28 = sadd.s32 1, %s19
      %s29 = scalar_select %p26, %s28, %s19
      %p30 = scmp.ge.s32.totalorder %s29, 2
      %s31 = scalar_select %p30, 0, %s29
      %s32 = ssub.s32 %s19, %s31
      %s33 = ssub.s32 %s20, %s27
      %s34 = sor.u32 %s32, %s33
      %p35 = scmp.eq.s32.totalorder %s34, 0
      %s37 = sadd.s32 %s36, 1
      %s38 = scalar_select %p35, %s36, %s37
      %p41 = pneg %p35
      %p42 = scmp.eq.s32.totalorder %s12, 1
      %p43 = por %p41, %p42
      %p44 = scmp.ne.s32.totalorder %s36, %s39
      %p45 = scmp.eq.s32.totalorder %s12, 0
      %p46 = por %p44, %p45
      %p47 = scmp.ne.s32.totalorder %s36, %s39
      %p48 = scmp.eq.s32.totalorder %s17, 1
      %p49 = por %p47, %p48
      %p50 = scmp.ne.s32.totalorder %s39, %s40
      %p51 = scmp.eq.s32.totalorder %s17, 0
      %p52 = por %p50, %p51
      %p53 = scmp.ne.s32.totalorder %s39, %s40
      %p54 = scmp.eq.s32.totalorder %s18, 1
      %p55 = por %p53, %p54
      %p57 = scmp.ne.s32.totalorder %s40, %s56
      %p58 = scmp.eq.s32.totalorder %s18, 0
      %p59 = por %p57, %p58
      %s60 = sadd.s32 %s20, 1
      %s61 = smul.u32 %s60, 4
      %s62 = sadd.s32 %s27, 1
      %s63 = smul.u32 %s62, 4
      %s64 = ssub.s32 %s19, %s31
      %s65 = ssub.s32 %s61, %s63
      %s66 = sor.u32 %s64, %s65
      %p67 = scmp.eq.s32.totalorder %s66, 0
      %s69 = sadd.s32 %s68, 1
      %s70 = scalar_select %p67, %s68, %s69
      %p73 = pneg %p67
      %p74 = scmp.eq.s32.totalorder %s12, 1
      %p75 = por %p73, %p74
      %p76 = scmp.ne.s32.totalorder %s68, %s71
      %p77 = scmp.eq.s32.totalorder %s12, 0
      %p78 = por %p76, %p77
      %p79 = scmp.ne.s32.totalorder %s68, %s71
      %p80 = scmp.eq.s32.totalorder %s17, 1
      %p81 = por %p79, %p80
      %p82 = scmp.ne.s32.totalorder %s71, %s72
      %p83 = scmp.eq.s32.totalorder %s17, 0
      %p84 = por %p82, %p83
      %p85 = scmp.ne.s32.totalorder %s71, %s72
      %p86 = scmp.eq.s32.totalorder %s18, 1
      %p87 = por %p85, %p86
      %p89 = scmp.ne.s32.totalorder %s72, %s88
      %p90 = scmp.eq.s32.totalorder %s18, 0
      %p91 = por %p89, %p90
      %s93 = sadd.s32 %s92, 1
      %p96 = scmp.eq.s32.totalorder %s12, 1
      %p97 = scmp.ne.s32.totalorder %s92, %s94
      %p98 = scmp.eq.s32.totalorder %s12, 0
      %p99 = por %p97, %p98
      %p100 = scmp.ne.s32.totalorder %s92, %s94
      %p101 = scmp.eq.s32.totalorder %s17, 1
      %p102 = por %p100, %p101
      %p103 = scmp.ne.s32.totalorder %s94, %s95
      %p104 = scmp.eq.s32.totalorder %s17, 0
      %p105 = por %p103, %p104
      %p106 = scmp.ne.s32.totalorder %s94, %s95
      %p107 = scmp.eq.s32.totalorder %s18, 1
      %p108 = por %p106, %p107
      %p110 = scmp.ne.s32.totalorder %s95, %s109
      %p111 = scmp.eq.s32.totalorder %s18, 0
      %p112 = por %p110, %p111
      %s113 = ssub.s32 %s19, %s31
      %s114 = ssub.s32 %s20, %s27
      %s115 = sor.u32 %s113, %s114
      %p116 = scmp.eq.s32.totalorder %s115, 0
      %s118 = sadd.s32 %s117, 1
      %s119 = scalar_select %p116, %s117, %s118
      %p122 = pneg %p116
      %p123 = scmp.eq.s32.totalorder %s12, 1
      %p124 = por %p122, %p123
      %p125 = scmp.ne.s32.totalorder %s117, %s120
      %p126 = scmp.eq.s32.totalorder %s12, 0
      %p127 = por %p125, %p126
      %p128 = scmp.ne.s32.totalorder %s117, %s120
      %p129 = scmp.eq.s32.totalorder %s17, 1
      %p130 = por %p128, %p129
      %p131 = scmp.ne.s32.totalorder %s120, %s121
      %p132 = scmp.eq.s32.totalorder %s17, 0
      %p133 = por %p131, %p132
      %p134 = scmp.ne.s32.totalorder %s120, %s121
      %p135 = scmp.eq.s32.totalorder %s18, 1
      %p136 = por %p134, %p135
      %p138 = scmp.ne.s32.totalorder %s121, %s137
      %p139 = scmp.eq.s32.totalorder %s18, 0
      %p140 = por %p138, %p139
      %p141 = scmp.le.s32.totalorder 1, %s12
      %p142 = scmp.lt.s32.totalorder %s12, 3
      %p143 = pnand %p141, %p142
      %p144 = pneg %p143
      // Predicated region
      $region9: #{a_call__.1} parent=5 // pred_check
        _
      $region10: #{a_call__.1} parent=5 // pred_check_branch
        %146 = sbr.rel (%p143) target = $region12
      $region11: #{a_call__.1} parent=5 // pred_region
        %s147 = ssub.s32 %s12, 1
        // Predicated region
        $region13: #{a_call__.1} parent=11 // pred_check
          %p148 = pneg %p105
        $region14: #{a_call__.1} parent=11 // pred_check_branch
          %150 = sbr.rel (%p148) target = $region16
        $region15: #{a_call__.1} parent=11 // pred_region
          _
        $region16: #{a_call__.1} parent=11 // pred_fallthru
          _
      $region12: #{a_call__.1} parent=5 // pred_fallthru
        _
      %p151 = scmp.lt.s32.totalorder %s12, 2
      // Predicated region
      $region17: #{a_call__.1} parent=5 // pred_check
        %p152 = pneg %p151
      $region18: #{a_call__.1} parent=5 // pred_check_branch
        %154 = sbr.rel (%p152) target = $region20
      $region19: #{a_call__.1} parent=5 // pred_region
        // Predicated region
        $region21: #{a_call__.1} parent=19 // pred_check
          %p155 = pneg %p46
        $region22: #{a_call__.1} parent=19 // pred_check_branch
          %157 = sbr.rel (%p155) target = $region24
        $region23: #{a_call__.1} parent=19 // pred_region
          %s158 = smul.u32 4, %s20
          %s159 = ssub.s32 5, %s158
          %p160 = scmp.lt.s32.totalorder %s159, 4
          %s161 = scalar_select %p160, %s159, 4
          %s162 = smul.u32 64, %s161
          %p163 = scmp.lt.s32.totalorder %s19, 1
          %s164 = scalar_select %p163, %s19, 1
          %p165 = scmp.lt.s32.totalorder %s158, 4
          %s166 = scalar_select %p165, %s158, 4
          %s167 = smul.addr %s164, 5
          %s168 = sadd.s32 %s166, %s167
          %s169 = smul.addr %s168, 4
          %s170 = scalar_lea.vmem %s0, %s169
          %s171 = smul.u32 4, %s20
          %s172 = ssub.s32 5, %s171
          %p173 = scmp.lt.s32.totalorder %s172, 4
          %s174 = scalar_select %p173, %s172, 4
          %s175 = smul.u32 64, %s174
        $region24: #{a_call__.1} parent=19 // pred_fallthru
          _
        // Predicated region
        $region25: #{a_call__.1} parent=19 // pred_check
          %p176 = pneg %p78
        $region26: #{a_call__.1} parent=19 // pred_check_branch
          %178 = sbr.rel (%p176) target = $region28
        $region27: #{a_call__.1} parent=19 // pred_region
          %s179 = sadd.s32 %s20, 1
          %s180 = smul.u32 %s179, 4
          %p181 = scmp.lt.s32.totalorder %s19, 1
          %s182 = scalar_select %p181, %s19, 1
          %p183 = scmp.lt.s32.totalorder %s180, 4
          %s184 = scalar_select %p183, %s180, 4
          %s185 = smul.addr %s182, 5
          %s186 = sadd.s32 %s184, %s185
          %s187 = smul.addr %s186, 4
          %s188 = scalar_lea.vmem %s1, %s187
          %s189 = sadd.s32 %s20, 1
          %s190 = smul.u32 %s189, 4
        $region28: #{a_call__.1} parent=19 // pred_fallthru
          _
      $region20: #{a_call__.1} parent=5 // pred_fallthru
        _
      %p191 = scmp.le.s32.totalorder 1, %s12
      %p192 = scmp.lt.s32.totalorder %s12, 3
      %p193 = pnand %p191, %p192
      %p194 = pneg %p193
      // Predicated region
      $region29: #{a_call__.1} parent=5 // pred_check
        _
      $region30: #{a_call__.1} parent=5 // pred_check_branch
        %196 = sbr.rel (%p193) target = $region32
      $region31: #{a_call__.1} parent=5 // pred_region
        %s197 = ssub.s32 %s12, 1
        %s198 = smul.u32 4, %s22
        %s199 = ssub.s32 5, %s198
        %p200 = scmp.lt.s32.totalorder %s199, 4
        %s201 = scalar_select %p200, %s199, 4
        %s202 = smul.u32 64, %s201
        %p203 = scmp.lt.s32.totalorder %s21, 1
        %s204 = scalar_select %p203, %s21, 1
        %p205 = scmp.lt.s32.totalorder %s198, 4
        %s206 = scalar_select %p205, %s198, 4
        %s207 = smul.addr %s204, 5
        %s208 = sadd.s32 %s206, %s207
        %s209 = smul.addr %s208, 4
        %s210 = scalar_lea.vmem %s0, %s209
        %p211 = pneg %p52
        %p212 = pneg %p49
        %s213 = sadd.s32 %s22, 1
        %s214 = smul.u32 %s213, 4
        %p215 = scmp.lt.s32.totalorder %s21, 1
        %s216 = scalar_select %p215, %s21, 1
        %p217 = scmp.lt.s32.totalorder %s214, 4
        %s218 = scalar_select %p217, %s214, 4
        %s219 = smul.addr %s216, 5
        %s220 = sadd.s32 %s218, %s219
        %s221 = smul.addr %s220, 4
        %s222 = scalar_lea.vmem %s1, %s221
        %p223 = pneg %p84
        %p224 = pneg %p81
        %p225 = pneg %p105
        %p226 = pneg %p102
        %p227 = pneg %p133
        %p228 = pneg %p130
        %s229 = sand.u32 %s120, 1
        %s230 = scalar_lea.sflag [#allocation3], %s229
        %s231 = sand.u32 %s120, 1
        %s232 = smul.addr %s231, 8
        %s233 = scalar_lea.vmem [#allocation2], %s232
        %s234 = smul.u32 4, %s22
        %s235 = ssub.s32 5, %s234
        %p236 = scmp.lt.s32.totalorder %s235, 4
        %s237 = scalar_select %p236, %s235, 4
        %s238 = smul.u32 64, %s237
        %p239 = scmp.lt.s32.totalorder %s21, 1
        %s240 = scalar_select %p239, %s21, 1
        %p241 = scmp.lt.s32.totalorder %s234, 4
        %s242 = scalar_select %p241, %s234, 4
        %s243 = smul.addr %s240, 5
        %s244 = sadd.s32 %s242, %s243
        %s245 = smul.addr %s244, 4
        %s246 = scalar_lea.vmem %s0, %s245
        %s247 = smul.u32 4, %s22
        %s248 = ssub.s32 5, %s247
        %p249 = scmp.lt.s32.totalorder %s248, 4
        %s250 = scalar_select %p249, %s248, 4
        %s251 = smul.u32 64, %s250
        %s252 = sadd.s32 %s22, 1
        %s253 = smul.u32 %s252, 4
        %p254 = scmp.lt.s32.totalorder %s21, 1
        %s255 = scalar_select %p254, %s21, 1
        %p256 = scmp.lt.s32.totalorder %s253, 4
        %s257 = scalar_select %p256, %s253, 4
        %s258 = smul.addr %s255, 5
        %s259 = sadd.s32 %s257, %s258
        %s260 = smul.addr %s259, 4
        %s261 = scalar_lea.vmem %s1, %s260
        %s262 = sadd.s32 %s22, 1
        %s263 = smul.u32 %s262, 4
        %s264 = smul.u32 2, %s22
        %v266 = vld [vmem:[%s246] sm:$0x7]
        %v267 = vld [vmem:[%s246 + $0x4] sm:$0x7]
        %v268 = vld [vmem:[%s246 + $0x8] sm:$0x7]
        %v269 = vld [vmem:[%s246 + $0xc] sm:$0x7]
        %v270 = vld [vmem:[%s261] sm:$0x7]
        %v275 = vunpack.c.l.b16 %v266
        %v276 = vunpack.c.l.b16 %v267
        %v277 = vunpack.c.l.b16 %v268
        %v278 = vunpack.c.l.b16 %v269
        %v279 = vpack.c.b16 %v275, %v275
        %v280 = vpack.c.b16 %v276, %v276
        %v281 = vpack.c.b16 %v277, %v277
        %v282 = vpack.c.b16 %v278, %v278
        %v284 = vshrl.u32 %v279, 16
        %v286 = vshll.u32 %v279, 16
        %v288 = vrot.slane %v286, 1
        %v289 = vor.u32 %v284, %v288
        %v291 = vshrl.u32 %v280, 16
        %v293 = vshll.u32 %v280, 16
        %v295 = vrot.slane %v293, 1
        %v296 = vor.u32 %v291, %v295
        %v298 = vshrl.u32 %v281, 16
        %v300 = vshll.u32 %v281, 16
        %v302 = vrot.slane %v300, 1
        %v303 = vor.u32 %v298, %v302
        %v305 = vshrl.u32 %v282, 16
        %v307 = vshll.u32 %v282, 16
        %v309 = vrot.slane %v307, 1
        %v310 = vor.u32 %v305, %v309
        %311 = vrot.lane.b32.xlu0 %v289, 64
        %v312 = vpop.permute.xlu0 %311
        %313 = vrot.lane.b32.xlu0 %v296, 64
        %v314 = vpop.permute.xlu0 %313
        %315 = vrot.lane.b32.xlu0 %v303, 64
        %v316 = vpop.permute.xlu0 %315
        %317 = vrot.lane.b32.xlu0 %v310, 64
        %v318 = vpop.permute.xlu0 %317
        %v320 = vunpack.c.l.b16 %v270
        %v321 = vpack.c.b16 %v320, %v320
        %v323 = vshrl.u32 %v321, 16
        %v325 = vshll.u32 %v321, 16
        %v327 = vrot.slane %v325, 1
        %v328 = vor.u32 %v323, %v327
        %329 = vrot.lane.b32.xlu0 %v328, 64
        %v330 = vpop.permute.xlu0 %329
        %vm331 = vcmask 523264
        %v334 = vsel %vm331, %v266, %v312
        %v337 = vsel %vm331, %v267, %v314
        %v340 = vsel %vm331, %v268, %v316
        %v343 = vsel %vm331, %v269, %v318
        %v346 = vsel %vm331, %v270, %v330
        %v352 = vcombine.low %v334, %v337
        %v354 = vunpack.c.l.s4 1983009808
        %v355 = vunpack.c.0.s8 %v354
        %v356 = vlaneseq
        %v357 = vshrl.u32 %v356, 7
        %v358 = vsub.s32 %v355, %v357
        %v359 = vrot.slane %v352, %v358
        %v360 = vcombine.low %v337, %v340
        %v362 = vunpack.c.l.s4 1983009808
        %v363 = vunpack.c.0.s8 %v362
        %v364 = vlaneseq
        %v365 = vshrl.u32 %v364, 7
        %v366 = vsub.s32 %v363, %v365
        %v367 = vrot.slane %v360, %v366
        %v368 = vcombine.low %v340, %v343
        %v370 = vunpack.c.l.s4 1983009808
        %v371 = vunpack.c.0.s8 %v370
        %v372 = vlaneseq
        %v373 = vshrl.u32 %v372, 7
        %v374 = vsub.s32 %v371, %v373
        %v375 = vrot.slane %v368, %v374
        %v376 = vcombine.low %v343, %v346
        %v378 = vunpack.c.l.s4 1983009808
        %v379 = vunpack.c.0.s8 %v378
        %v380 = vlaneseq
        %v381 = vshrl.u32 %v380, 7
        %v382 = vsub.s32 %v379, %v381
        %v383 = vrot.slane %v376, %v382
        %v384 = vld [vmem:[%s2] sm:$0xf]
        %v385 = vld [vmem:[%s2 + $0x4] sm:$0xf]
        %v386 = vld [vmem:[%s2 + $0x8] sm:$0xf]
        %v387 = vld [vmem:[%s2 + $0xc] sm:$0xf]
        %v388 = vld [vmem:[%s2 + $0x10] sm:$0xf]
        %v389 = vld [vmem:[%s2 + $0x14] sm:$0xf]
        %v390 = vld [vmem:[%s2 + $0x18] sm:$0xf]
        %v391 = vld [vmem:[%s2 + $0x1c] sm:$0xf]
        %v392 = vld [vmem:[%s2 + $0x20] sm:$0xf]
        %v393 = vld [vmem:[%s2 + $0x24] sm:$0xf]
        %v394 = vld [vmem:[%s2 + $0x28] sm:$0xf]
        %v395 = vld [vmem:[%s2 + $0x2c] sm:$0xf]
        %v396 = vld [vmem:[%s2 + $0x30] sm:$0xf]
        %v397 = vld [vmem:[%s2 + $0x34] sm:$0xf]
        %v398 = vld [vmem:[%s2 + $0x38] sm:$0xf]
        %v399 = vld [vmem:[%s2 + $0x3c] sm:$0xf]
        %v400 = vld [vmem:[%s2 + $0x40] sm:$0xf]
        %v401 = vld [vmem:[%s2 + $0x44] sm:$0xf]
        %v402 = vld [vmem:[%s2 + $0x48] sm:$0xf]
        %v403 = vld [vmem:[%s2 + $0x4c] sm:$0xf]
        %v404 = vld [vmem:[%s2 + $0x50] sm:$0xf]
        %v405 = vld [vmem:[%s2 + $0x54] sm:$0xf]
        %v406 = vld [vmem:[%s2 + $0x58] sm:$0xf]
        %v407 = vld [vmem:[%s2 + $0x5c] sm:$0xf]
        %v408 = vld [vmem:[%s2 + $0x60] sm:$0xf]
        %v409 = vld [vmem:[%s2 + $0x64] sm:$0xf]
        %v410 = vld [vmem:[%s2 + $0x68] sm:$0xf]
        %v411 = vld [vmem:[%s2 + $0x6c] sm:$0xf]
        %v412 = vld [vmem:[%s2 + $0x70] sm:$0xf]
        %v413 = vld [vmem:[%s2 + $0x74] sm:$0xf]
        %v414 = vld [vmem:[%s2 + $0x78] sm:$0xf]
        %v415 = vld [vmem:[%s2 + $0x7c] sm:$0xf]
        %v416 = vcombine.low %v359, %v367
        %v417 = vcombine.low %v375, %v383
        %v419 = vunpack.c.l.s4 1983009808
        %v420 = vunpack.c.0.s8 %v419
        %v421 = vlaneseq
        %v422 = vshrl.u32 %v421, 7
        %v423 = vsub.s32 %v420, %v422
        %v424 = vrot.slane %v416, %v423
        %v426 = vunpack.c.l.s4 1983009808
        %v427 = vunpack.c.0.s8 %v426
        %v428 = vlaneseq
        %v429 = vshrl.u32 %v428, 7
        %v430 = vsub.s32 %v427, %v429
        %v431 = vrot.slane %v417, %v430
        %v432 = vcombine.low %v424, %v431
        %v433 = vcombine.high %v424, %v431
        %v468 = vunpack.c.l.b16 %v384
        %v469 = vunpack.c.l.b16 %v385
        %v470 = vunpack.c.l.b16 %v386
        %v471 = vunpack.c.l.b16 %v387
        %v472 = vunpack.c.l.b16 %v388
        %v473 = vunpack.c.l.b16 %v389
        %v474 = vunpack.c.l.b16 %v390
        %v475 = vunpack.c.l.b16 %v391
        %v476 = vunpack.c.l.b16 %v392
        %v477 = vunpack.c.l.b16 %v393
        %v478 = vunpack.c.l.b16 %v394
        %v479 = vunpack.c.l.b16 %v395
        %v480 = vunpack.c.l.b16 %v396
        %v481 = vunpack.c.l.b16 %v397
        %v482 = vunpack.c.l.b16 %v398
        %v483 = vunpack.c.l.b16 %v399
        %v484 = vunpack.c.l.b16 %v400
        %v485 = vunpack.c.l.b16 %v401
        %v486 = vunpack.c.l.b16 %v402
        %v487 = vunpack.c.l.b16 %v403
        %v488 = vunpack.c.l.b16 %v404
        %v489 = vunpack.c.l.b16 %v405
        %v490 = vunpack.c.l.b16 %v406
        %v491 = vunpack.c.l.b16 %v407
        %v492 = vunpack.c.l.b16 %v408
        %v493 = vunpack.c.l.b16 %v409
        %v494 = vunpack.c.l.b16 %v410
        %v495 = vunpack.c.l.b16 %v411
        %v496 = vunpack.c.l.b16 %v412
        %v497 = vunpack.c.l.b16 %v413
        %v498 = vunpack.c.l.b16 %v414
        %v499 = vunpack.c.l.b16 %v415
        %v500 = vpack.c.b16 %v469, %v468
        %v501 = vpack.c.b16 %v471, %v470
        %v502 = vpack.c.b16 %v473, %v472
        %v503 = vpack.c.b16 %v475, %v474
        %v504 = vpack.c.b16 %v477, %v476
        %v505 = vpack.c.b16 %v479, %v478
        %v506 = vpack.c.b16 %v481, %v480
        %v507 = vpack.c.b16 %v483, %v482
        %v508 = vpack.c.b16 %v485, %v484
        %v509 = vpack.c.b16 %v487, %v486
        %v510 = vpack.c.b16 %v489, %v488
        %v511 = vpack.c.b16 %v491, %v490
        %v512 = vpack.c.b16 %v493, %v492
        %v513 = vpack.c.b16 %v495, %v494
        %v514 = vpack.c.b16 %v497, %v496
        %v515 = vpack.c.b16 %v499, %v498
        %532 = vmatprep.subr.bf16.mxu0 0
        %533 = vmatpush1.bf16.msra.mxu0 %v500
        %534 = vmatprep.subr.bf16.mxu0 0
        %535 = vmatpush1.bf16.msra.mxu0 %v501
        %536 = vmatprep.subr.bf16.mxu0 0
        %537 = vmatpush1.bf16.msra.mxu0 %v502
        %538 = vmatprep.subr.bf16.mxu0 0
        %539 = vmatpush1.bf16.msra.mxu0 %v503
        %540 = vmatprep.subr.bf16.mxu0 0
        %541 = vmatpush1.bf16.msra.mxu0 %v504
        %542 = vmatprep.subr.bf16.mxu0 0
        %543 = vmatpush1.bf16.msra.mxu0 %v505
        %544 = vmatprep.subr.bf16.mxu0 0
        %545 = vmatpush1.bf16.msra.mxu0 %v506
        %546 = vmatprep.subr.bf16.mxu0 0
        %547 = vmatpush1.bf16.msra.mxu0 %v507
        %548 = vmatprep.subr.bf16.mxu0 0
        %549 = vmatpush1.bf16.msra.mxu0 %v508
        %550 = vmatprep.subr.bf16.mxu0 0
        %551 = vmatpush1.bf16.msra.mxu0 %v509
        %552 = vmatprep.subr.bf16.mxu0 0
        %553 = vmatpush1.bf16.msra.mxu0 %v510
        %554 = vmatprep.subr.bf16.mxu0 0
        %555 = vmatpush1.bf16.msra.mxu0 %v511
        %556 = vmatprep.subr.bf16.mxu0 0
        %557 = vmatpush1.bf16.msra.mxu0 %v512
        %558 = vmatprep.subr.bf16.mxu0 0
        %559 = vmatpush1.bf16.msra.mxu0 %v513
        %560 = vmatprep.subr.bf16.mxu0 0
        %561 = vmatpush1.bf16.msra.mxu0 %v514
        %562 = vmatprep.subr.bf16.mxu0 0
        %563 = vmatpush1.bf16.msra.mxu0 %v515
        %564 = vmatprep.mubr.bf16.mxu0 %v433
        %565 = vmatmul.mubr.bf16.gmra.mrb[0].mxu0 %v432
        %v566 = vpop.f32.mrb[0].mxu0
        %v567 = vadd.f32 0.0, %v566
        %v568 = vpop.f32.mrb[0].mxu0
        %v569 = vpop.f32.mrb[0].mxu0
        %v570 = vadd.f32 0.0, %v569
        %v571 = vpop.f32.mrb[0].mxu0
        %572 = vdwg.mxu0
        %v573 = vpack.c.bf16 %v570, %v567
        %v575 = vunpack.c.l.b16 %v573
        %v576 = vunpack.c.h.b16 %v573
        %v577 = vpack.c.b16 %v575, %v575
        %v578 = vpack.c.b16 %v576, %v576
        %vm581 = vcmask 257024
        %582 = vst.msk [vmem:[%s233] sm:$0xf] %vm581, %v577
        %583 = vst.msk [vmem:[%s233 + $0x4] sm:$0xf] %vm581, %v578
        %s584 = sand.u32 %s120, 1
        %s585 = scalar_lea.sflag [#allocation3], %s584
        %s586 = sand.u32 %s120, 1
        %s587 = smul.addr %s586, 8
        %s588 = scalar_lea.vmem [#allocation2], %s587
        // Predicated region
        $region33: #{a_call__.1} parent=31 // pred_check
          %p589 = pneg %p130
        $region34: #{a_call__.1} parent=31 // pred_check_branch
          %591 = sbr.rel (%p589) target = $region36
        $region35: #{a_call__.1} parent=31 // pred_region
          %s592 = smul.u32 2, %s22
          %s594 = ssub.s32 128, 128
          %595 = vsyncadd %s585, %s594
          %s596 = smul.addr %s21, 2
          %s597 = sadd.s32 %s592, %s596
          %s598 = smul.addr %s597, 64
          %s599 = scalar_lea.hbm %s3, %s598
          %s600 = sshll.u32 %s588, 4
          %s601 = int_to_ptr.vmem [resolvable:$true] %s600
          %606 = dma.vmem_to_hbm [thread:$0]  %s601, 128, %s599, %s585, 64, 64, 4
        $region36: #{a_call__.1} parent=31 // pred_fallthru
          _
      $region32: #{a_call__.1} parent=5 // pred_fallthru
        _
      %p607 = scmp.le.s32.totalorder 2, %s12
      // Predicated region
      $region37: #{a_call__.1} parent=5 // pred_check
        %p608 = pneg %p607
      $region38: #{a_call__.1} parent=5 // pred_check_branch
        %610 = sbr.rel (%p608) target = $region40
      $region39: #{a_call__.1} parent=5 // pred_region
        %s611 = ssub.s32 %s12, 2
        // Predicated region
        $region41: #{a_call__.1} parent=39 // pred_check
          %p612 = pneg %p136
        $region42: #{a_call__.1} parent=39 // pred_check_branch
          %614 = sbr.rel (%p612) target = $region44
        $region43: #{a_call__.1} parent=39 // pred_region
          %s615 = sand.u32 %s121, 1
          %s616 = scalar_lea.sflag [#allocation3], %s615
          %s617 = sand.u32 %s121, 1
          %s618 = smul.addr %s617, 8
          %s619 = scalar_lea.vmem [#allocation2], %s618
          %620 = dma.done %s616, 128
        $region44: #{a_call__.1} parent=39 // pred_fallthru
          _
      $region40: #{a_call__.1} parent=5 // pred_fallthru
        _
    $region6: #{a_call__.1} parent=1 // loop_footer
      %s16 = sadd.s32 1, %s12
    $region7: #{a_call__.1} parent=1 // loop_footer_branch
      %11 = sbr.rel target = $region3
    $region8: #{a_call__.1} parent=1 // loop_exit
      _
    %621 = vsyncpa [#allocation3], 1
    %s622 = scalar_lea.sflag [#allocation3], 1
    %623 = vsyncpa %s622, 1

</llo_original>
